<compile_context>
chip_gen: v7x
topology: tpu7x:2x2x1
jax: 0.10.0
libtpu: 0.0.40
codegen_flags: <defaults>
</compile_context>

<pallas_src>
import functools

import jax
import jax.numpy as jnp
from jax.experimental import pallas as pl
from jax.experimental.pallas import tpu as pltpu

LANES = 128          # padded feature width (lane axis) for hidden activations
OUT_LANES = 8        # narrow HBM output width (valid lanes 0..out_dim-1)
BATCH = 8            # demo batch
IN_DIM = 16
OUT_DIM = 4
N_LAYERS = 6

TILE_B_MAX = 2048        # batch tile upper bound (amortize ~0.35us/step overhead)
TARGET_GRID_STEPS = 4    # keep >=2 grid steps so both TCs get work on v7x


def _round_up(n, m):
    return ((n + m - 1) // m) * m


# Contraction (sublane) padding per layer, multiples of 16 (bf16 sublane pack):
#   fc1: in_dim->30, fc2: 30->60, fc3: 60->120, fc3a: 120->15, fc4: 15->8,
#   fc5: pooled 4 -> out_dim.
K_SIZES = (_round_up(IN_DIM, 16), 32, 64, 128, 16, 16)
K_OFFS = tuple(int(sum(K_SIZES[:i])) for i in range(N_LAYERS))
TOTAL_K = int(sum(K_SIZES))          # 272 rows of stacked weights


# ---------------------------------------------------------------------------
# Pallas kernel: the entire Network02 forward (5x dense+relu, pool, dense+relu)
# ---------------------------------------------------------------------------
def mlp_kernel(x_ref, w_ref, b_ref, o_ref, *, epi_dtype):
    """One batch tile through the whole network.

    x_ref : (tile_b, K_SIZES[0]) bf16
    w_ref : (TOTAL_K, 128)       bf16  -- all 6 layer weights, stacked on sublanes
    b_ref : (N_LAYERS, 128)      f32   -- all 6 layer biases
    o_ref : (tile_b, OUT_LANES)  f32
    """

    def dense_relu(h_bf16, layer):
        off, k = K_OFFS[layer], K_SIZES[layer]
        y = jnp.dot(h_bf16, w_ref[off:off + k, :],
                    preferred_element_type=jnp.float32)
        # Epilogue (bias + ReLU) in epi_dtype: bf16 on v6e/v7x (bf16-native
        # VALU, halves elementwise vreg count), f32 on v5e (no bf16 VALU).
        b = b_ref[layer:layer + 1, :].astype(epi_dtype)
        return jnp.maximum(y.astype(epi_dtype) + b, 0.0)

    def trim(h, k):
        # Keep only the lanes the next weight's contraction covers (padded
        # lanes are exact zeros: zero weights + zero bias + ReLU), cast to
        # bf16 for the MXU.
        return h[:, :k].astype(jnp.bfloat16)

    h = dense_relu(x_ref[...], 0)                 # relu(fc1)  : 30 valid lanes
    h = dense_relu(trim(h, K_SIZES[1]), 1)        # relu(fc2)  : 60 valid lanes
    h = dense_relu(trim(h, K_SIZES[2]), 2)        # relu(fc3)  : 120 valid lanes
    h = dense_relu(trim(h, K_SIZES[3]), 3)        # relu(fc3a) : 15 valid lanes
    h = dense_relu(trim(h, K_SIZES[4]), 4)        # relu(fc4)  : 8 valid values

    # TODO(synk): the literal PyTorch Network02 feeds fc4's 8-wide output into
    # fc5 (declared in_features=4), a shape error in PyTorch.  We bridge with
    # max_pool1d(kernel=2) exactly as Network01 does, so fc5's (4 -> out_dim)
    # shape is honored.
    #
    # fc4's padded weight scatters its 8 outputs so pool-pair members sit 64
    # lanes apart: (o0,o2,o4,o6) at lanes 0..3, (o1,o3,o5,o7) at lanes 64..67.
    # A 64-lane rotate (runs on the otherwise idle XLU slot; 64 == -64 mod 128
    # so direction doesn't matter) lines the pairs up and jnp.maximum pools
    # them at lanes 0..3.  fc5's padded weight only reads lanes 0..3.
    pooled = jnp.maximum(h, pltpu.roll(h, shift=64, axis=1))
    h = dense_relu(trim(pooled, K_SIZES[5]), 5)   # relu(fc5)

    # Narrow writeback: only OUT_LANES lanes reach HBM (16x less write traffic
    # than a 128-lane f32 output).
    o_ref[...] = h[:, :OUT_LANES].astype(o_ref.dtype)


# ---------------------------------------------------------------------------
# Parameter setup / one-time padding (plain JAX, done once, outside the jit)
# ---------------------------------------------------------------------------
def init_linear(key, in_f, out_f):
    """PyTorch-style nn.Linear init: U(-1/sqrt(in), 1/sqrt(in))."""
    kw, kb = jax.random.split(key)
    bound = 1.0 / (in_f ** 0.5)
    w = jax.random.uniform(kw, (out_f, in_f), jnp.float32, -bound, bound)
    b = jax.random.uniform(kb, (out_f,), jnp.float32, -bound, bound)
    return w, b


def make_params(key, in_dim, out_dim):
    ks = jax.random.split(key, 6)
    return {
        "fc1": init_linear(ks[0], in_dim, 30),
        "fc2": init_linear(ks[1], 30, 60),
        "fc3": init_linear(ks[2], 60, 120),
        "fc3a": init_linear(ks[3], 120, 15),
        "fc4": init_linear(ks[4], 15, 8),
        "fc5": init_linear(ks[5], 4, out_dim),
    }


def build_padded_params(params):
    """Pack all layers into one (TOTAL_K, 128) bf16 weight blob (stored as
    (in, out) per layer, contraction rows stacked) and one (6, 128) f32 bias
    blob.  fc4's outputs are scattered so max_pool pairs sit 64 lanes apart."""
    w_blob = jnp.zeros((TOTAL_K, LANES), jnp.float32)
    b_blob = jnp.zeros((N_LAYERS, LANES), jnp.float32)
    for li, name in enumerate(("fc1", "fc2", "fc3", "fc3a", "fc4", "fc5")):
        w, b = params[name]
        out_f, in_f = w.shape
        off = K_OFFS[li]
        if name == "fc4":
            w_blob = w_blob.at[off:off + in_f, 0:4].set(w[0::2, :].T)    # o0,o2,o4,o6
            w_blob = w_blob.at[off:off + in_f, 64:68].set(w[1::2, :].T)  # o1,o3,o5,o7
            b_blob = b_blob.at[li, 0:4].set(b[0::2])
            b_blob = b_blob.at[li, 64:68].set(b[1::2])
        else:
            w_blob = w_blob.at[off:off + in_f, :out_f].set(w.T)
            b_blob = b_blob.at[li, :out_f].set(b)
    return w_blob.astype(jnp.bfloat16), b_blob


def pick_epilogue_dtype():
    """bf16 epilogue on bf16-VALU chips (v6e/v7x), f32 elsewhere (v5e, ...)."""
    try:
        kind = jax.devices()[0].device_kind.lower()
    except Exception:
        return jnp.float32
    return jnp.bfloat16 if ("v6" in kind or "v7" in kind) else jnp.float32


# ---------------------------------------------------------------------------
# Forward wrapper: batch tiled onto the grid, weights VMEM-resident
# ---------------------------------------------------------------------------
@functools.partial(jax.jit, static_argnames=("out_dim", "epi_dtype"))
def network02_forward(x, w_blob, b_blob, out_dim, epi_dtype):
    n_batch, in_dim = x.shape
    in_pad = K_SIZES[0]
    assert in_dim <= in_pad
    assert out_dim <= OUT_LANES

    # Batch tile: large enough to amortize per-grid-step overhead, but keep
    # ~TARGET_GRID_STEPS steps when the batch allows so megacore ("parallel")
    # can split tiles across TensorCores.  Multiple of 16 (bf16 sublane pack).
    tile_b = _round_up(max(1, -(-n_batch // TARGET_GRID_STEPS)), 16)
    tile_b = min(tile_b, TILE_B_MAX)
    n_pad = _round_up(n_batch, tile_b)

    if n_pad == n_batch and in_dim == in_pad:
        xp = x.astype(jnp.bfloat16)      # no extra HBM pass for padding
    else:
        xp = jnp.zeros((n_pad, in_pad), jnp.bfloat16)
        xp = xp.at[:n_batch, :in_dim].set(x.astype(jnp.bfloat16))

    out = pl.pallas_call(
        functools.partial(mlp_kernel, epi_dtype=epi_dtype),
        out_shape=jax.ShapeDtypeStruct((n_pad, OUT_LANES), jnp.float32),
        grid=(n_pad // tile_b,),
        in_specs=[
            pl.BlockSpec((tile_b, in_pad), lambda i: (i, 0)),
            pl.BlockSpec((TOTAL_K, LANES), lambda i: (0, 0)),   # VMEM-resident weights
            pl.BlockSpec((N_LAYERS, LANES), lambda i: (0, 0)),  # VMEM-resident biases
        ],
        out_specs=pl.BlockSpec((tile_b, OUT_LANES), lambda i: (i, 0)),
        compiler_params=pltpu.CompilerParams(
            dimension_semantics=("parallel",)),   # v7x: batch tiles over both TCs
    )(xp, w_blob, b_blob)

    # mimic x.squeeze().squeeze(); drop padded batch rows and padded lanes
    return jnp.squeeze(out[:n_batch, :out_dim])


# ---------------------------------------------------------------------------
# Pure-JAX reference with the same precision policy as the kernel
# ---------------------------------------------------------------------------
def reference_forward(x, params, epi_dtype):
    def dense_relu(h, name):
        w, b = params[name]
        y = jnp.dot(h.astype(jnp.bfloat16), w.T.astype(jnp.bfloat16),
                    preferred_element_type=jnp.float32)
        return jnp.maximum(y.astype(epi_dtype) + b.astype(epi_dtype), 0.0)

    h = x
    for name in ("fc1", "fc2", "fc3", "fc3a", "fc4"):
        h = dense_relu(h, name)
    h = jnp.max(h.reshape(h.shape[0], 4, 2), axis=-1)   # max_pool1d(2) bridge
    h = dense_relu(h, "fc5")
    return jnp.squeeze(h.astype(jnp.float32))


if __name__ == "__main__":
    key = jax.random.PRNGKey(0)
    kx, kp = jax.random.split(key)
    x = jax.random.normal(kx, (BATCH, IN_DIM), jnp.float32)
    params = make_params(kp, IN_DIM, OUT_DIM)
    w_blob, b_blob = build_padded_params(params)     # padded/packed once
    epi_dtype = pick_epilogue_dtype()

    y = network02_forward(x, w_blob, b_blob, out_dim=OUT_DIM, epi_dtype=epi_dtype)
    y = jax.block_until_ready(y)

    y_ref = reference_forward(x, params, epi_dtype)
    assert y.shape == y_ref.shape, (y.shape, y_ref.shape)
    assert jnp.allclose(y, y_ref, atol=1e-2, rtol=1e-2), "mismatch vs reference"

    print("KERNEL_OK")
</pallas_src>

<mosaic_0001>
module attributes {stable_mosaic.version = 11 : i64} {
  func.func @mlp_kernel(%arg0: i32, %arg1: memref<16x16xbf16, #tpu.memory_space<vmem>>, %arg2: memref<272x128xbf16, #tpu.memory_space<vmem>>, %arg3: memref<6x128xf32, #tpu.memory_space<vmem>>, %arg4: memref<16x8xf32, #tpu.memory_space<vmem>>) attributes {dimension_semantics = [#tpu.dimension_semantics<parallel>], iteration_bounds = array<i64: 1>, scalar_prefetch = 0 : i64, scratch_operands = 0 : i64, tpu.core_type = #tpu.core_type<tc>, window_params = [{transform_indices = @transform_0, window_bounds = array<i64: 16, 16>}, {pipeline_mode = #tpu.pipeline_mode<synchronous>, transform_indices = @transform_1, window_bounds = array<i64: 272, 128>}, {pipeline_mode = #tpu.pipeline_mode<synchronous>, transform_indices = @transform_2, window_bounds = array<i64: 6, 128>}, {transform_indices = @transform_3, window_bounds = array<i64: 16, 8>}]} {
    %c0 = arith.constant 0 : index
    %c0_0 = arith.constant 0 : index
    %0 = vector.load %arg1[%c0, %c0_0] : memref<16x16xbf16, #tpu.memory_space<vmem>>, vector<16x16xbf16>
    %c0_1 = arith.constant 0 : index
    %c0_2 = arith.constant 0 : index
    %1 = vector.load %arg2[%c0_1, %c0_2] : memref<272x128xbf16, #tpu.memory_space<vmem>>, vector<16x128xbf16>
    %cst = arith.constant dense<0.000000e+00> : vector<16x128xf32>
    %2 = tpu.matmul %0, %1, %cst {dimension_numbers = #tpu.dot_dimension_numbers<[1], [0], [0], [1], [0, 0, 1, 1], [], []>} : vector<16x16xbf16>, vector<16x128xbf16>, vector<16x128xf32> -> vector<16x128xf32>
    %c0_3 = arith.constant 0 : index
    %c0_4 = arith.constant 0 : index
    %3 = vector.load %arg3[%c0_3, %c0_4] : memref<6x128xf32, #tpu.memory_space<vmem>>, vector<1x128xf32>
    %4 = vector.broadcast %3 : vector<1x128xf32> to vector<16x128xf32>
    %5 = arith.addf %2, %4 : vector<16x128xf32>
    %cst_5 = arith.constant 0.000000e+00 : f32
    %6 = vector.broadcast %cst_5 : f32 to vector<16x128xf32>
    %7 = arith.maximumf %5, %6 : vector<16x128xf32>
    %8 = vector.extract_strided_slice %7 {offsets = [0, 0], sizes = [16, 32], strides = [1, 1]} : vector<16x128xf32> to vector<16x32xf32>
    %9 = arith.truncf %8 : vector<16x32xf32> to vector<16x32xbf16>
    %c16 = arith.constant 16 : index
    %c0_6 = arith.constant 0 : index
    %10 = vector.load %arg2[%c16, %c0_6] : memref<272x128xbf16, #tpu.memory_space<vmem>>, vector<32x128xbf16>
    %cst_7 = arith.constant dense<0.000000e+00> : vector<16x128xf32>
    %11 = tpu.matmul %9, %10, %cst_7 {dimension_numbers = #tpu.dot_dimension_numbers<[1], [0], [0], [1], [0, 0, 1, 1], [], []>} : vector<16x32xbf16>, vector<32x128xbf16>, vector<16x128xf32> -> vector<16x128xf32>
    %c1 = arith.constant 1 : index
    %c0_8 = arith.constant 0 : index
    %12 = vector.load %arg3[%c1, %c0_8] : memref<6x128xf32, #tpu.memory_space<vmem>>, vector<1x128xf32>
    %13 = vector.broadcast %12 : vector<1x128xf32> to vector<16x128xf32>
    %14 = arith.addf %11, %13 : vector<16x128xf32>
    %cst_9 = arith.constant 0.000000e+00 : f32
    %15 = vector.broadcast %cst_9 : f32 to vector<16x128xf32>
    %16 = arith.maximumf %14, %15 : vector<16x128xf32>
    %17 = vector.extract_strided_slice %16 {offsets = [0, 0], sizes = [16, 64], strides = [1, 1]} : vector<16x128xf32> to vector<16x64xf32>
    %18 = arith.truncf %17 : vector<16x64xf32> to vector<16x64xbf16>
    %c48 = arith.constant 48 : index
    %c0_10 = arith.constant 0 : index
    %19 = vector.load %arg2[%c48, %c0_10] : memref<272x128xbf16, #tpu.memory_space<vmem>>, vector<64x128xbf16>
    %cst_11 = arith.constant dense<0.000000e+00> : vector<16x128xf32>
    %20 = tpu.matmul %18, %19, %cst_11 {dimension_numbers = #tpu.dot_dimension_numbers<[1], [0], [0], [1], [0, 0, 1, 1], [], []>} : vector<16x64xbf16>, vector<64x128xbf16>, vector<16x128xf32> -> vector<16x128xf32>
    %c2 = arith.constant 2 : index
    %c0_12 = arith.constant 0 : index
    %21 = vector.load %arg3[%c2, %c0_12] : memref<6x128xf32, #tpu.memory_space<vmem>>, vector<1x128xf32>
    %22 = vector.broadcast %21 : vector<1x128xf32> to vector<16x128xf32>
    %23 = arith.addf %20, %22 : vector<16x128xf32>
    %cst_13 = arith.constant 0.000000e+00 : f32
    %24 = vector.broadcast %cst_13 : f32 to vector<16x128xf32>
    %25 = arith.maximumf %23, %24 : vector<16x128xf32>
    %26 = arith.truncf %25 : vector<16x128xf32> to vector<16x128xbf16>
    %c112 = arith.constant 112 : index
    %c0_14 = arith.constant 0 : index
    %27 = vector.load %arg2[%c112, %c0_14] : memref<272x128xbf16, #tpu.memory_space<vmem>>, vector<128x128xbf16>
    %cst_15 = arith.constant dense<0.000000e+00> : vector<16x128xf32>
    %28 = tpu.matmul %26, %27, %cst_15 {dimension_numbers = #tpu.dot_dimension_numbers<[1], [0], [0], [1], [0, 0, 1, 1], [], []>} : vector<16x128xbf16>, vector<128x128xbf16>, vector<16x128xf32> -> vector<16x128xf32>
    %c3 = arith.constant 3 : index
    %c0_16 = arith.constant 0 : index
    %29 = vector.load %arg3[%c3, %c0_16] : memref<6x128xf32, #tpu.memory_space<vmem>>, vector<1x128xf32>
    %30 = vector.broadcast %29 : vector<1x128xf32> to vector<16x128xf32>
    %31 = arith.addf %28, %30 : vector<16x128xf32>
    %cst_17 = arith.constant 0.000000e+00 : f32
    %32 = vector.broadcast %cst_17 : f32 to vector<16x128xf32>
    %33 = arith.maximumf %31, %32 : vector<16x128xf32>
    %34 = vector.extract_strided_slice %33 {offsets = [0, 0], sizes = [16, 16], strides = [1, 1]} : vector<16x128xf32> to vector<16x16xf32>
    %35 = arith.truncf %34 : vector<16x16xf32> to vector<16x16xbf16>
    %c240 = arith.constant 240 : index
    %c0_18 = arith.constant 0 : index
    %36 = vector.load %arg2[%c240, %c0_18] : memref<272x128xbf16, #tpu.memory_space<vmem>>, vector<16x128xbf16>
    %cst_19 = arith.constant dense<0.000000e+00> : vector<16x128xf32>
    %37 = tpu.matmul %35, %36, %cst_19 {dimension_numbers = #tpu.dot_dimension_numbers<[1], [0], [0], [1], [0, 0, 1, 1], [], []>} : vector<16x16xbf16>, vector<16x128xbf16>, vector<16x128xf32> -> vector<16x128xf32>
    %c4 = arith.constant 4 : index
    %c0_20 = arith.constant 0 : index
    %38 = vector.load %arg3[%c4, %c0_20] : memref<6x128xf32, #tpu.memory_space<vmem>>, vector<1x128xf32>
    %39 = vector.broadcast %38 : vector<1x128xf32> to vector<16x128xf32>
    %40 = arith.addf %37, %39 : vector<16x128xf32>
    %cst_21 = arith.constant 0.000000e+00 : f32
    %41 = vector.broadcast %cst_21 : f32 to vector<16x128xf32>
    %42 = arith.maximumf %40, %41 : vector<16x128xf32>
    %c64_i32 = arith.constant 64 : i32
    %43 = tpu.dynamic_rotate %42 by %c64_i32 dim 1 : vector<16x128xf32>, i32 -> vector<16x128xf32>
    %44 = arith.maximumf %42, %43 : vector<16x128xf32>
    %45 = vector.extract_strided_slice %44 {offsets = [0, 0], sizes = [16, 16], strides = [1, 1]} : vector<16x128xf32> to vector<16x16xf32>
    %46 = arith.truncf %45 : vector<16x16xf32> to vector<16x16xbf16>
    %c256 = arith.constant 256 : index
    %c0_22 = arith.constant 0 : index
    %47 = vector.load %arg2[%c256, %c0_22] : memref<272x128xbf16, #tpu.memory_space<vmem>>, vector<16x128xbf16>
    %cst_23 = arith.constant dense<0.000000e+00> : vector<16x128xf32>
    %48 = tpu.matmul %46, %47, %cst_23 {dimension_numbers = #tpu.dot_dimension_numbers<[1], [0], [0], [1], [0, 0, 1, 1], [], []>} : vector<16x16xbf16>, vector<16x128xbf16>, vector<16x128xf32> -> vector<16x128xf32>
    %c5 = arith.constant 5 : index
    %c0_24 = arith.constant 0 : index
    %49 = vector.load %arg3[%c5, %c0_24] : memref<6x128xf32, #tpu.memory_space<vmem>>, vector<1x128xf32>
    %50 = vector.broadcast %49 : vector<1x128xf32> to vector<16x128xf32>
    %51 = arith.addf %48, %50 : vector<16x128xf32>
    %cst_25 = arith.constant 0.000000e+00 : f32
    %52 = vector.broadcast %cst_25 : f32 to vector<16x128xf32>
    %53 = arith.maximumf %51, %52 : vector<16x128xf32>
    %54 = vector.extract_strided_slice %53 {offsets = [0, 0], sizes = [16, 8], strides = [1, 1]} : vector<16x128xf32> to vector<16x8xf32>
    %c0_26 = arith.constant 0 : index
    %c0_27 = arith.constant 0 : index
    %55 = vector.load %arg4[%c0_26, %c0_27] : memref<16x8xf32, #tpu.memory_space<vmem>>, vector<16x8xf32>
    tpu.vector_store %arg4[%c0_26, %c0_27], %54 {strides = array<i32>} : memref<16x8xf32, #tpu.memory_space<vmem>>, vector<16x8xf32>,
    return
  }
  func.func @transform_0(%arg0: i32) -> (i32, i32) {
    %c0_i32 = arith.constant 0 : i32
    %c0_i32_0 = arith.constant 0 : i32
    return %arg0, %c0_i32 : i32, i32
  }
  func.func @transform_1(%arg0: i32) -> (i32, i32) {
    %c0_i32 = arith.constant 0 : i32
    %c0_i32_0 = arith.constant 0 : i32
    %c0_i32_1 = arith.constant 0 : i32
    return %c0_i32, %c0_i32_0 : i32, i32
  }
  func.func @transform_2(%arg0: i32) -> (i32, i32) {
    %c0_i32 = arith.constant 0 : i32
    %c0_i32_0 = arith.constant 0 : i32
    %c0_i32_1 = arith.constant 0 : i32
    return %c0_i32, %c0_i32_0 : i32, i32
  }
  func.func @transform_3(%arg0: i32) -> (i32, i32) {
    %c0_i32 = arith.constant 0 : i32
    %c0_i32_0 = arith.constant 0 : i32
    return %arg0, %c0_i32 : i32, i32
  }
}

</mosaic_0001>

<llo_original>
// kernel: network02_forward.1
$region0: #{network02_forward.1}
  #allocation0 [shape = 'u32[]', space=smem, size = 0x4, offset = 0x4, fixed_abs, tag = 'smem constant byte address 0x4 - core index']
  #allocation1 [shape = 'u32[144,128]{1,0:T(1,128)}', space=vmem, size = 0x12000, scoped, tag = 'internal scratch']
  %s0 = inlined_call_operand.vmem [shape: bf16[16,16], index: 0, kind: input, shape index: {}]
  %s1 = inlined_call_operand.hbm [shape: bf16[272,128], index: 1, kind: input, shape index: {}]
  %s2 = inlined_call_operand.vmem [shape: f32[6,128], index: 2, kind: input, shape index: {}]
  %s3 = inlined_call_operand.vmem [shape: f32[16,8], index: 3, kind: output, shape index: {}]
  %s4 = sld [smem:[#allocation0]]
  $region26: #{network02_forward.1} parent=0
    _
  %s6 = ssub.s32 1, %s4
  %s7 = scalar_select 0, %s6, %s4
  $region1: #{network02_forward.1} parent=0
    #allocation2 [shape = 'u8[69632]{0}', space=vmem, size = 0x11000, scoped, tag = 'input window, operand 1, single buffered']
    #allocation3 [shape = 's32[1]{0}', space=sflag, size = 0x4, scoped, tag = 'scoped memory for network02_forward.1']
    %8 = vsyncpa [#allocation3], 0
    // Predicated region
    $region2: #{network02_forward.1} parent=1 // pred_check
      _
    $region3: #{network02_forward.1} parent=1 // pred_check_branch
      %10 = sbr.rel (0) target = $region5
    $region4: #{network02_forward.1} parent=1 // pred_region
      _
    $region5: #{network02_forward.1} parent=1 // pred_fallthru
      _
    // Predicated region
    $region6: #{network02_forward.1} parent=1 // pred_check
      _
    $region7: #{network02_forward.1} parent=1 // pred_check_branch
      %12 = sbr.rel (0) target = $region9
    $region8: #{network02_forward.1} parent=1 // pred_region
      %s14 = ssub.s32 2176, 2176
      %15 = vsyncadd [#allocation3], %s14
      %s16 = sshll.u32 [#allocation2], 4
      %s17 = int_to_ptr.vmem [resolvable:$true] %s16
      %22 = dma.hbm_to_vmem [thread:$0]  %s1, 2176, %s17, [#allocation3], 64, 64, 4
    $region9: #{network02_forward.1} parent=1 // pred_fallthru
      _
    // Predicated region
    $region10: #{network02_forward.1} parent=1 // pred_check
      _
    $region11: #{network02_forward.1} parent=1 // pred_check_branch
      %24 = sbr.rel (0) target = $region13
    $region12: #{network02_forward.1} parent=1 // pred_region
      _
    $region13: #{network02_forward.1} parent=1 // pred_fallthru
      _
    // Predicated region
    $region14: #{network02_forward.1} parent=1 // pred_check
      _
    $region15: #{network02_forward.1} parent=1 // pred_check_branch
      %26 = sbr.rel (0) target = $region17
    $region16: #{network02_forward.1} parent=1 // pred_region
      %27 = dma.done [#allocation3], 2176
    $region17: #{network02_forward.1} parent=1 // pred_fallthru
      _
    %v29 = vld [vmem:[%s0] sm:$0xf]
    %v30 = vld [vmem:[%s0 + $0x4] sm:$0xf]
    %v31 = vld [vmem:[#allocation2] sm:$0xf]
    %v32 = vld [vmem:[#allocation2 + $0x4] sm:$0xf]
    %v33 = vld [vmem:[%s2] sm:$0x1]
    %v34 = vlaneseq
    %v35 = vshrl.u32 %v34, 7
    %v36 = vsub.s32 0, %v35
    %v37 = vrot.slane %v33, %v36
    %v40 = vunpack.c.l.b16 %v29
    %v41 = vunpack.c.l.b16 %v30
    %v42 = vpack.c.b16 %v41, %v40
    %v45 = vunpack.c.l.b16 %v31
    %v46 = vunpack.c.l.b16 %v32
    %v47 = vpack.c.b16 %v46, %v45
    %vm49 = vcmask 130048
    %v51 = vsel %vm49, %v42, 0
    %53 = vmatprep.subr.bf16.mxu0 0
    %54 = vmatpush1.bf16.msra.mxu0 %v47
    %55 = vmatprep.subr.bf16.mxu0 0
    %56 = vmatpush1.bf16.msra.mxu0 0
    %57 = vmatprep.subr.bf16.mxu0 0
    %58 = vmatpush1.bf16.msra.mxu0 0
    %59 = vmatprep.subr.bf16.mxu0 0
    %60 = vmatpush1.bf16.msra.mxu0 0
    %61 = vmatprep.subr.bf16.mxu0 0
    %62 = vmatpush1.bf16.msra.mxu0 0
    %63 = vmatprep.subr.bf16.mxu0 0
    %64 = vmatpush1.bf16.msra.mxu0 0
    %65 = vmatprep.subr.bf16.mxu0 0
    %66 = vmatpush1.bf16.msra.mxu0 0
    %67 = vmatprep.subr.bf16.mxu0 0
    %68 = vmatpush1.bf16.msra.mxu0 0
    %69 = vmatprep.subr.bf16.mxu0 0
    %70 = vmatpush1.bf16.msra.mxu0 0
    %71 = vmatprep.subr.bf16.mxu0 0
    %72 = vmatpush1.bf16.msra.mxu0 0
    %73 = vmatprep.subr.bf16.mxu0 0
    %74 = vmatpush1.bf16.msra.mxu0 0
    %75 = vmatprep.subr.bf16.mxu0 0
    %76 = vmatpush1.bf16.msra.mxu0 0
    %77 = vmatprep.subr.bf16.mxu0 0
    %78 = vmatpush1.bf16.msra.mxu0 0
    %79 = vmatprep.subr.bf16.mxu0 0
    %80 = vmatpush1.bf16.msra.mxu0 0
    %81 = vmatprep.subr.bf16.mxu0 0
    %82 = vmatpush1.bf16.msra.mxu0 0
    %83 = vmatprep.subr.bf16.mxu0 0
    %84 = vmatpush1.bf16.msra.mxu0 0
    %85 = vmatprep.mubr.bf16.mxu0 0
    %86 = vmatmul.mubr.bf16.gmra.mrb[0].mxu0 %v51
    %v87 = vpop.f32.mrb[0].mxu0
    %v88 = vadd.f32 %v37, %v87
    %v89 = vpop.f32.mrb[0].mxu0
    %v90 = vpop.f32.mrb[0].mxu0
    %v91 = vadd.f32 %v37, %v90
    %v92 = vpop.f32.mrb[0].mxu0
    %93 = vdwg.mxu0
    %v94 = vmax.f32 %v88, 0.0
    %v95 = vmax.f32 %v91, 0.0
    %v96 = vpack.c.bf16 %v95, %v94
    %v97 = vld [vmem:[#allocation2 + $0x8] sm:$0xf]
    %v98 = vld [vmem:[#allocation2 + $0xc] sm:$0xf]
    %v99 = vld [vmem:[#allocation2 + $0x10] sm:$0xf]
    %v100 = vld [vmem:[#allocation2 + $0x14] sm:$0xf]
    %v101 = vld [vmem:[%s2 + $0x1] sm:$0x1]
    %v102 = vlaneseq
    %v103 = vshrl.u32 %v102, 7
    %v104 = vsub.s32 0, %v103
    %v105 = vrot.slane %v101, %v104
    %v110 = vunpack.c.l.b16 %v97
    %v111 = vunpack.c.l.b16 %v98
    %v112 = vunpack.c.l.b16 %v99
    %v113 = vunpack.c.l.b16 %v100
    %v114 = vpack.c.b16 %v111, %v110
    %v115 = vpack.c.b16 %v113, %v112
    %vm118 = vcmask 261120
    %v120 = vsel %vm118, %v96, 0
    %122 = vmatprep.subr.bf16.mxu0 0
    %123 = vmatpush1.bf16.msra.mxu0 %v114
    %124 = vmatprep.subr.bf16.mxu0 0
    %125 = vmatpush1.bf16.msra.mxu0 %v115
    %126 = vmatprep.subr.bf16.mxu0 0
    %127 = vmatpush1.bf16.msra.mxu0 0
    %128 = vmatprep.subr.bf16.mxu0 0
    %129 = vmatpush1.bf16.msra.mxu0 0
    %130 = vmatprep.subr.bf16.mxu0 0
    %131 = vmatpush1.bf16.msra.mxu0 0
    %132 = vmatprep.subr.bf16.mxu0 0
    %133 = vmatpush1.bf16.msra.mxu0 0
    %134 = vmatprep.subr.bf16.mxu0 0
    %135 = vmatpush1.bf16.msra.mxu0 0
    %136 = vmatprep.subr.bf16.mxu0 0
    %137 = vmatpush1.bf16.msra.mxu0 0
    %138 = vmatprep.subr.bf16.mxu0 0
    %139 = vmatpush1.bf16.msra.mxu0 0
    %140 = vmatprep.subr.bf16.mxu0 0
    %141 = vmatpush1.bf16.msra.mxu0 0
    %142 = vmatprep.subr.bf16.mxu0 0
    %143 = vmatpush1.bf16.msra.mxu0 0
    %144 = vmatprep.subr.bf16.mxu0 0
    %145 = vmatpush1.bf16.msra.mxu0 0
    %146 = vmatprep.subr.bf16.mxu0 0
    %147 = vmatpush1.bf16.msra.mxu0 0
    %148 = vmatprep.subr.bf16.mxu0 0
    %149 = vmatpush1.bf16.msra.mxu0 0
    %150 = vmatprep.subr.bf16.mxu0 0
    %151 = vmatpush1.bf16.msra.mxu0 0
    %152 = vmatprep.subr.bf16.mxu0 0
    %153 = vmatpush1.bf16.msra.mxu0 0
    %154 = vmatprep.mubr.bf16.mxu0 0
    %155 = vmatmul.mubr.bf16.gmra.mrb[0].mxu0 %v120
    %v156 = vpop.f32.mrb[0].mxu0
    %v157 = vadd.f32 %v105, %v156
    %v158 = vpop.f32.mrb[0].mxu0
    %v159 = vpop.f32.mrb[0].mxu0
    %v160 = vadd.f32 %v105, %v159
    %v161 = vpop.f32.mrb[0].mxu0
    %162 = vdwg.mxu0
    %v163 = vmax.f32 %v157, 0.0
    %v164 = vmax.f32 %v160, 0.0
    %v165 = vpack.c.bf16 %v164, %v163
    %v166 = vld [vmem:[#allocation2 + $0x18] sm:$0xf]
    %v167 = vld [vmem:[#allocation2 + $0x1c] sm:$0xf]
    %v168 = vld [vmem:[#allocation2 + $0x20] sm:$0xf]
    %v169 = vld [vmem:[#allocation2 + $0x24] sm:$0xf]
    %v170 = vld [vmem:[#allocation2 + $0x28] sm:$0xf]
    %v171 = vld [vmem:[#allocation2 + $0x2c] sm:$0xf]
    %v172 = vld [vmem:[#allocation2 + $0x30] sm:$0xf]
    %v173 = vld [vmem:[#allocation2 + $0x34] sm:$0xf]
    %v174 = vld [vmem:[%s2 + $0x2] sm:$0x1]
    %v175 = vlaneseq
    %v176 = vshrl.u32 %v175, 7
    %v177 = vsub.s32 0, %v176
    %v178 = vrot.slane %v174, %v177
    %v187 = vunpack.c.l.b16 %v166
    %v188 = vunpack.c.l.b16 %v167
    %v189 = vunpack.c.l.b16 %v168
    %v190 = vunpack.c.l.b16 %v169
    %v191 = vunpack.c.l.b16 %v170
    %v192 = vunpack.c.l.b16 %v171
    %v193 = vunpack.c.l.b16 %v172
    %v194 = vunpack.c.l.b16 %v173
    %v195 = vpack.c.b16 %v188, %v187
    %v196 = vpack.c.b16 %v190, %v189
    %v197 = vpack.c.b16 %v192, %v191
    %v198 = vpack.c.b16 %v194, %v193
    %vm203 = vcmask 523264
    %v205 = vsel %vm203, %v165, 0
    %207 = vmatprep.subr.bf16.mxu0 0
    %208 = vmatpush1.bf16.msra.mxu0 %v195
    %209 = vmatprep.subr.bf16.mxu0 0
    %210 = vmatpush1.bf16.msra.mxu0 %v196
    %211 = vmatprep.subr.bf16.mxu0 0
    %212 = vmatpush1.bf16.msra.mxu0 %v197
    %213 = vmatprep.subr.bf16.mxu0 0
    %214 = vmatpush1.bf16.msra.mxu0 %v198
    %215 = vmatprep.subr.bf16.mxu0 0
    %216 = vmatpush1.bf16.msra.mxu0 0
    %217 = vmatprep.subr.bf16.mxu0 0
    %218 = vmatpush1.bf16.msra.mxu0 0
    %219 = vmatprep.subr.bf16.mxu0 0
    %220 = vmatpush1.bf16.msra.mxu0 0
    %221 = vmatprep.subr.bf16.mxu0 0
    %222 = vmatpush1.bf16.msra.mxu0 0
    %223 = vmatprep.subr.bf16.mxu0 0
    %224 = vmatpush1.bf16.msra.mxu0 0
    %225 = vmatprep.subr.bf16.mxu0 0
    %226 = vmatpush1.bf16.msra.mxu0 0
    %227 = vmatprep.subr.bf16.mxu0 0
    %228 = vmatpush1.bf16.msra.mxu0 0
    %229 = vmatprep.subr.bf16.mxu0 0
    %230 = vmatpush1.bf16.msra.mxu0 0
    %231 = vmatprep.subr.bf16.mxu0 0
    %232 = vmatpush1.bf16.msra.mxu0 0
    %233 = vmatprep.subr.bf16.mxu0 0
    %234 = vmatpush1.bf16.msra.mxu0 0
    %235 = vmatprep.subr.bf16.mxu0 0
    %236 = vmatpush1.bf16.msra.mxu0 0
    %237 = vmatprep.subr.bf16.mxu0 0
    %238 = vmatpush1.bf16.msra.mxu0 0
    %239 = vmatprep.mubr.bf16.mxu0 0
    %240 = vmatmul.mubr.bf16.gmra.mrb[0].mxu0 %v205
    %v241 = vpop.f32.mrb[0].mxu0
    %v242 = vadd.f32 %v178, %v241
    %v243 = vpop.f32.mrb[0].mxu0
    %v244 = vpop.f32.mrb[0].mxu0
    %v245 = vadd.f32 %v178, %v244
    %v246 = vpop.f32.mrb[0].mxu0
    %247 = vdwg.mxu0
    %v248 = vmax.f32 %v242, 0.0
    %v249 = vmax.f32 %v245, 0.0
    %v250 = vpack.c.bf16 %v249, %v248
    %v251 = vld [vmem:[#allocation2 + $0x38] sm:$0xf]
    %v252 = vld [vmem:[#allocation2 + $0x3c] sm:$0xf]
    %v253 = vld [vmem:[#allocation2 + $0x40] sm:$0xf]
    %v254 = vld [vmem:[#allocation2 + $0x44] sm:$0xf]
    %v255 = vld [vmem:[#allocation2 + $0x48] sm:$0xf]
    %v256 = vld [vmem:[#allocation2 + $0x4c] sm:$0xf]
    %v257 = vld [vmem:[#allocation2 + $0x50] sm:$0xf]
    %v258 = vld [vmem:[#allocation2 + $0x54] sm:$0xf]
    %v259 = vld [vmem:[#allocation2 + $0x58] sm:$0xf]
    %v260 = vld [vmem:[#allocation2 + $0x5c] sm:$0xf]
    %v261 = vld [vmem:[#allocation2 + $0x60] sm:$0xf]
    %v262 = vld [vmem:[#allocation2 + $0x64] sm:$0xf]
    %v263 = vld [vmem:[#allocation2 + $0x68] sm:$0xf]
    %v264 = vld [vmem:[#allocation2 + $0x6c] sm:$0xf]
    %v265 = vld [vmem:[#allocation2 + $0x70] sm:$0xf]
    %v266 = vld [vmem:[#allocation2 + $0x74] sm:$0xf]
    %v267 = vld [vmem:[%s2 + $0x3] sm:$0x1]
    %v268 = vlaneseq
    %v269 = vshrl.u32 %v268, 7
    %v270 = vsub.s32 0, %v269
    %v271 = vrot.slane %v267, %v270
    %v288 = vunpack.c.l.b16 %v251
    %v289 = vunpack.c.l.b16 %v252
    %v290 = vunpack.c.l.b16 %v253
    %v291 = vunpack.c.l.b16 %v254
    %v292 = vunpack.c.l.b16 %v255
    %v293 = vunpack.c.l.b16 %v256
    %v294 = vunpack.c.l.b16 %v257
    %v295 = vunpack.c.l.b16 %v258
    %v296 = vunpack.c.l.b16 %v259
    %v297 = vunpack.c.l.b16 %v260
    %v298 = vunpack.c.l.b16 %v261
    %v299 = vunpack.c.l.b16 %v262
    %v300 = vunpack.c.l.b16 %v263
    %v301 = vunpack.c.l.b16 %v264
    %v302 = vunpack.c.l.b16 %v265
    %v303 = vunpack.c.l.b16 %v266
    %v304 = vpack.c.b16 %v289, %v288
    %v305 = vpack.c.b16 %v291, %v290
    %v306 = vpack.c.b16 %v293, %v292
    %v307 = vpack.c.b16 %v295, %v294
    %v308 = vpack.c.b16 %v297, %v296
    %v309 = vpack.c.b16 %v299, %v298
    %v310 = vpack.c.b16 %v301, %v300
    %v311 = vpack.c.b16 %v303, %v302
    %320 = vmatprep.subr.bf16.mxu0 0
    %321 = vmatpush1.bf16.msra.mxu0 %v304
    %322 = vmatprep.subr.bf16.mxu0 0
    %323 = vmatpush1.bf16.msra.mxu0 %v305
    %324 = vmatprep.subr.bf16.mxu0 0
    %325 = vmatpush1.bf16.msra.mxu0 %v306
    %326 = vmatprep.subr.bf16.mxu0 0
    %327 = vmatpush1.bf16.msra.mxu0 %v307
    %328 = vmatprep.subr.bf16.mxu0 0
    %329 = vmatpush1.bf16.msra.mxu0 %v308
    %330 = vmatprep.subr.bf16.mxu0 0
    %331 = vmatpush1.bf16.msra.mxu0 %v309
    %332 = vmatprep.subr.bf16.mxu0 0
    %333 = vmatpush1.bf16.msra.mxu0 %v310
    %334 = vmatprep.subr.bf16.mxu0 0
    %335 = vmatpush1.bf16.msra.mxu0 %v311
    %336 = vmatprep.subr.bf16.mxu0 0
    %337 = vmatpush1.bf16.msra.mxu0 0
    %338 = vmatprep.subr.bf16.mxu0 0
    %339 = vmatpush1.bf16.msra.mxu0 0
    %340 = vmatprep.subr.bf16.mxu0 0
    %341 = vmatpush1.bf16.msra.mxu0 0
    %342 = vmatprep.subr.bf16.mxu0 0
    %343 = vmatpush1.bf16.msra.mxu0 0
    %344 = vmatprep.subr.bf16.mxu0 0
    %345 = vmatpush1.bf16.msra.mxu0 0
    %346 = vmatprep.subr.bf16.mxu0 0
    %347 = vmatpush1.bf16.msra.mxu0 0
    %348 = vmatprep.subr.bf16.mxu0 0
    %349 = vmatpush1.bf16.msra.mxu0 0
    %350 = vmatprep.subr.bf16.mxu0 0
    %351 = vmatpush1.bf16.msra.mxu0 0
    %352 = vmatprep.mubr.bf16.mxu0 0
    %353 = vmatmul.mubr.bf16.gmra.mrb[0].mxu0 %v250
    %v354 = vpop.f32.mrb[0].mxu0
    %v355 = vadd.f32 %v271, %v354
    %v356 = vpop.f32.mrb[0].mxu0
    %v357 = vpop.f32.mrb[0].mxu0
    %v358 = vadd.f32 %v271, %v357
    %v359 = vpop.f32.mrb[0].mxu0
    %360 = vdwg.mxu0
    %v361 = vmax.f32 %v355, 0.0
    %v362 = vmax.f32 %v358, 0.0
    %v363 = vpack.c.bf16 %v362, %v361
    %v364 = vld [vmem:[#allocation2 + $0x78] sm:$0xf]
    %v365 = vld [vmem:[#allocation2 + $0x7c] sm:$0xf]
    %v366 = vld [vmem:[%s2 + $0x4] sm:$0x1]
    %v367 = vlaneseq
    %v368 = vshrl.u32 %v367, 7
    %v369 = vsub.s32 0, %v368
    %v370 = vrot.slane %v366, %v369
    %v373 = vunpack.c.l.b16 %v364
    %v374 = vunpack.c.l.b16 %v365
    %v375 = vpack.c.b16 %v374, %v373
    %v378 = vsel %vm49, %v363, 0
    %380 = vmatprep.subr.bf16.mxu0 0
    %381 = vmatpush1.bf16.msra.mxu0 %v375
    %382 = vmatprep.subr.bf16.mxu0 0
    %383 = vmatpush1.bf16.msra.mxu0 0
    %384 = vmatprep.subr.bf16.mxu0 0
    %385 = vmatpush1.bf16.msra.mxu0 0
    %386 = vmatprep.subr.bf16.mxu0 0
    %387 = vmatpush1.bf16.msra.mxu0 0
    %388 = vmatprep.subr.bf16.mxu0 0
    %389 = vmatpush1.bf16.msra.mxu0 0
    %390 = vmatprep.subr.bf16.mxu0 0
    %391 = vmatpush1.bf16.msra.mxu0 0
    %392 = vmatprep.subr.bf16.mxu0 0
    %393 = vmatpush1.bf16.msra.mxu0 0
    %394 = vmatprep.subr.bf16.mxu0 0
    %395 = vmatpush1.bf16.msra.mxu0 0
    %396 = vmatprep.subr.bf16.mxu0 0
    %397 = vmatpush1.bf16.msra.mxu0 0
    %398 = vmatprep.subr.bf16.mxu0 0
    %399 = vmatpush1.bf16.msra.mxu0 0
    %400 = vmatprep.subr.bf16.mxu0 0
    %401 = vmatpush1.bf16.msra.mxu0 0
    %402 = vmatprep.subr.bf16.mxu0 0
    %403 = vmatpush1.bf16.msra.mxu0 0
    %404 = vmatprep.subr.bf16.mxu0 0
    %405 = vmatpush1.bf16.msra.mxu0 0
    %406 = vmatprep.subr.bf16.mxu0 0
    %407 = vmatpush1.bf16.msra.mxu0 0
    %408 = vmatprep.subr.bf16.mxu0 0
    %409 = vmatpush1.bf16.msra.mxu0 0
    %410 = vmatprep.subr.bf16.mxu0 0
    %411 = vmatpush1.bf16.msra.mxu0 0
    %412 = vmatprep.mubr.bf16.mxu0 0
    %413 = vmatmul.mubr.bf16.gmra.mrb[0].mxu0 %v378
    %v414 = vpop.f32.mrb[0].mxu0
    %v415 = vadd.f32 %v370, %v414
    %v416 = vpop.f32.mrb[0].mxu0
    %v417 = vpop.f32.mrb[0].mxu0
    %v418 = vadd.f32 %v370, %v417
    %v419 = vpop.f32.mrb[0].mxu0
    %420 = vdwg.mxu0
    %v421 = vmax.f32 %v415, 0.0
    %v422 = vmax.f32 %v418, 0.0
    %423 = vrot.lane.b32.xlu0 %v421, 64
    %v424 = vpop.permute.xlu0 %423
    %425 = vrot.lane.b32.xlu0 %v422, 64
    %v426 = vpop.permute.xlu0 %425
    %v427 = vmax.f32 %v421, %v424
    %v428 = vmax.f32 %v422, %v426
    %v429 = vpack.c.bf16 %v428, %v427
    %v430 = vld [vmem:[#allocation2 + $0x80] sm:$0xf]
    %v431 = vld [vmem:[#allocation2 + $0x84] sm:$0xf]
    %v432 = vld [vmem:[%s2 + $0x5] sm:$0x1]
    %v433 = vlaneseq
    %v434 = vshrl.u32 %v433, 7
    %v435 = vsub.s32 0, %v434
    %v436 = vrot.slane %v432, %v435
    %v439 = vunpack.c.l.b16 %v430
    %v440 = vunpack.c.l.b16 %v431
    %v441 = vpack.c.b16 %v440, %v439
    %v444 = vsel %vm49, %v429, 0
    %446 = vmatprep.subr.bf16.mxu0 0
    %447 = vmatpush1.bf16.msra.mxu0 %v441
    %448 = vmatprep.subr.bf16.mxu0 0
    %449 = vmatpush1.bf16.msra.mxu0 0
    %450 = vmatprep.subr.bf16.mxu0 0
    %451 = vmatpush1.bf16.msra.mxu0 0
    %452 = vmatprep.subr.bf16.mxu0 0
    %453 = vmatpush1.bf16.msra.mxu0 0
    %454 = vmatprep.subr.bf16.mxu0 0
    %455 = vmatpush1.bf16.msra.mxu0 0
    %456 = vmatprep.subr.bf16.mxu0 0
    %457 = vmatpush1.bf16.msra.mxu0 0
    %458 = vmatprep.subr.bf16.mxu0 0
    %459 = vmatpush1.bf16.msra.mxu0 0
    %460 = vmatprep.subr.bf16.mxu0 0
    %461 = vmatpush1.bf16.msra.mxu0 0
    %462 = vmatprep.subr.bf16.mxu0 0
    %463 = vmatpush1.bf16.msra.mxu0 0
    %464 = vmatprep.subr.bf16.mxu0 0
    %465 = vmatpush1.bf16.msra.mxu0 0
    %466 = vmatprep.subr.bf16.mxu0 0
    %467 = vmatpush1.bf16.msra.mxu0 0
    %468 = vmatprep.subr.bf16.mxu0 0
    %469 = vmatpush1.bf16.msra.mxu0 0
    %470 = vmatprep.subr.bf16.mxu0 0
    %471 = vmatpush1.bf16.msra.mxu0 0
    %472 = vmatprep.subr.bf16.mxu0 0
    %473 = vmatpush1.bf16.msra.mxu0 0
    %474 = vmatprep.subr.bf16.mxu0 0
    %475 = vmatpush1.bf16.msra.mxu0 0
    %476 = vmatprep.subr.bf16.mxu0 0
    %477 = vmatpush1.bf16.msra.mxu0 0
    %478 = vmatprep.mubr.bf16.mxu0 0
    %479 = vmatmul.mubr.bf16.gmra.mrb[0].mxu0 %v444
    %v480 = vpop.f32.mrb[0].mxu0
    %v481 = vadd.f32 %v436, %v480
    %v482 = vpop.f32.mrb[0].mxu0
    %v483 = vpop.f32.mrb[0].mxu0
    %v484 = vadd.f32 %v436, %v483
    %v485 = vpop.f32.mrb[0].mxu0
    %486 = vdwg.mxu0
    %v487 = vmax.f32 %v481, 0.0
    %v488 = vmax.f32 %v484, 0.0
    %vm489 = vcmask 64512
    %490 = vst.msk [vmem:[%s3] sm:$0xff] %vm489, %v487
    %491 = vst.msk [vmem:[%s3 + $0x8] sm:$0xff] %vm489, %v488
    // Predicated region
    $region18: #{network02_forward.1} parent=1 // pred_check
      _
    $region19: #{network02_forward.1} parent=1 // pred_check_branch
      %493 = sbr.rel (0) target = $region21
    $region20: #{network02_forward.1} parent=1 // pred_region
      _
    $region21: #{network02_forward.1} parent=1 // pred_fallthru
      _
    // Predicated region
    $region22: #{network02_forward.1} parent=1 // pred_check
      _
    $region23: #{network02_forward.1} parent=1 // pred_check_branch
      %495 = sbr.rel (0) target = $region25
    $region24: #{network02_forward.1} parent=1 // pred_region
      _
    $region25: #{network02_forward.1} parent=1 // pred_fallthru
      _
    %496 = vsyncpa [#allocation3], 1

</llo_original>
